<compile_context>
chip_gen: v7x
topology: tpu7x:2x2x1
jax: 0.10.0
libtpu: 0.0.40
codegen_flags: <defaults>
</compile_context>

<pallas_src>
import jax
import jax.numpy as jnp
from jax.experimental import pallas as pl
from jax.experimental.pallas import tpu as pltpu

# ----------------------------- config -----------------------------
B, C_IN, H, W = 2, 4, 16, 16
K = 3                        # conv kernel size, padding=1, stride=1
HIDDEN = 32                  # conv output channels == feature dim
NUM_CLASSES = 10

KK_C = K * K * C_IN          # 36: folded contraction depth of the conv matmul
NROWS = B * H * W            # 512 conv output positions (multiple of 8)
TILE_ROWS = 128              # row tile: 128x128 f32 result = 16 vregs
NTILES = NROWS // TILE_ROWS  # 4
HIDDEN_PAD = 128             # lane-dense feature width
CLS_PAD = 128                # lane-dense logits width
B_PAD = 8                    # row-dense output batch


# ----------------------------- kernel -----------------------------
def adversarial_kernel(xcol_ref, w36_ref, bconv_ref, pool_ref, wfc_ref,
                       bfc_ref, logits_ref, feats_ref):
    """Fused 3x3 conv (as one K=36 matmul) + bias + ReLU + avg-pool + linear.

    xcol_ref  : [NROWS, KK_C]        bf16  im2col'd image (row = one output pixel)
    w36_ref   : [KK_C, HIDDEN_PAD]   bf16  folded conv weights (zero-padded lanes)
    bconv_ref : [1, HIDDEN_PAD]      f32
    pool_ref  : [B_PAD, NROWS]       bf16  per-batch avg-pool matrix (1/(H*W))
    wfc_ref   : [HIDDEN_PAD, CLS_PAD] bf16
    bfc_ref   : [1, CLS_PAD]         f32
    logits_ref: [B_PAD, CLS_PAD]     f32 out
    feats_ref : [B_PAD, HIDDEN_PAD]  f32 out
    """
    w36 = w36_ref[...]
    bconv = bconv_ref[...]

    # Register-tiled accumulation: no VMEM scratch, no RMW passes.  feats is a
    # chained value so Mosaic/MRB can accumulate without extra vst traffic.
    feats = jnp.zeros((B_PAD, HIDDEN_PAD), jnp.float32)
    for t in range(NTILES):                     # static unroll, 4 tiles
        r0 = t * TILE_ROWS                      # 0,128,256,384 -> sublane-aligned
        x_t = xcol_ref[r0:r0 + TILE_ROWS, :]    # [128, 36] bf16
        acts = jnp.dot(x_t, w36, preferred_element_type=jnp.float32)  # [128, 128]
        acts = jnp.maximum(acts + bconv, 0.0)   # bias + ReLU (padded lanes stay 0)
        feats = feats + jnp.dot(pool_ref[:, r0:r0 + TILE_ROWS],
                                acts.astype(jnp.bfloat16),
                                preferred_element_type=jnp.float32)   # [8, 128]

    feats_ref[...] = feats

    # Classifier head (bf16 MXU inputs, f32 accumulate + f32 bias).
    logits_ref[...] = (jnp.dot(feats.astype(jnp.bfloat16), wfc_ref[...],
                               preferred_element_type=jnp.float32)
                       + bfc_ref[...])                                # [8, 128]


# ----------------------------- glue -----------------------------
@jax.jit
def adversarial_forward(x, conv_w, conv_b, fc_w, fc_b):
    """Returns (logits [B, NUM_CLASSES], features [B, HIDDEN])  ==
    AdversarialModel(base_model, modality='image')(x, return_features=True)."""
    # Tiny wrapper-side im2col (~37 KiB bf16): row p=(b,h,w), col (dh*K+dw)*C+c.
    x_nhwc = jnp.transpose(x, (0, 2, 3, 1))                        # [B,H,W,C]
    xpad = jnp.pad(x_nhwc, ((0, 0), (1, 1), (1, 1), (0, 0)))       # [B,H+2,W+2,C]
    patches = [xpad[:, dh:dh + H, dw:dw + W, :]
               for dh in range(K) for dw in range(K)]              # 9 x [B,H,W,C]
    xcol = jnp.stack(patches, axis=3).reshape(NROWS, KK_C)         # [512, 36]
    xcol = xcol.astype(jnp.bfloat16)

    # Folded conv weights: w36[(dh*K+dw)*C + c, o] = conv_w[o, c, dh, dw].
    w36 = jnp.transpose(conv_w, (2, 3, 1, 0)).reshape(KK_C, HIDDEN)
    w36 = jnp.pad(w36, ((0, 0), (0, HIDDEN_PAD - HIDDEN))).astype(jnp.bfloat16)

    bconv = jnp.pad(conv_b, (0, HIDDEN_PAD - HIDDEN)).reshape(1, HIDDEN_PAD)
    wfc = jnp.pad(fc_w.T, ((0, HIDDEN_PAD - HIDDEN), (0, CLS_PAD - NUM_CLASSES)))
    wfc = wfc.astype(jnp.bfloat16)                                 # [128, 128]
    bfc = jnp.pad(fc_b, (0, CLS_PAD - NUM_CLASSES)).reshape(1, CLS_PAD)

    # Per-batch average-pool matrix: pool[b, p] = 1/(H*W) iff p belongs to batch
    # b, else 0.  Values are exactly representable in bf16 (2^-8).  Rows 2..7
    # (padded batch) are all-zero, so padded feature rows come out exactly 0.
    col_b = jnp.arange(NROWS) // (H * W)
    pool = jnp.where(col_b[None, :] == jnp.arange(B_PAD)[:, None],
                     1.0 / (H * W), 0.0).astype(jnp.bfloat16)      # [8, 512]

    flops = (2 * NROWS * KK_C * HIDDEN_PAD          # conv matmul
             + 2 * B_PAD * NROWS * HIDDEN_PAD       # pooling matmul
             + 2 * B_PAD * HIDDEN_PAD * CLS_PAD)    # classifier
    bytes_accessed = (xcol.size * 2 + w36.size * 2 + bconv.size * 4
                      + pool.size * 2 + wfc.size * 2 + bfc.size * 4
                      + B_PAD * (CLS_PAD + HIDDEN_PAD) * 4)

    vmem = pl.BlockSpec(memory_space=pltpu.MemorySpace.VMEM)
    logits_p, feats_p = pl.pallas_call(
        adversarial_kernel,
        out_shape=(
            jax.ShapeDtypeStruct((B_PAD, CLS_PAD), jnp.float32),
            jax.ShapeDtypeStruct((B_PAD, HIDDEN_PAD), jnp.float32),
        ),
        in_specs=[vmem] * 6,
        out_specs=(vmem, vmem),
        cost_estimate=pl.CostEstimate(flops=flops, transcendentals=0,
                                      bytes_accessed=bytes_accessed),
        # NOTE: single invocation, no grid — total footprint ~100 KiB, so one
        # TensorCore suffices on v5e/v6e/v7x and grid-step overhead (~0.35 us)
        # would dominate.  If B/H/W are scaled up, add a row-tiled grid over
        # NROWS with dimension_semantics=("parallel",) and size the per-tile
        # budget for v7x's 32 MiB scoped VMEM (half of v5e/v6e's).
    )(xcol, w36, bconv, pool, wfc, bfc)

    # Slice padded rows/lanes back to the PyTorch shapes.
    return logits_p[:B, :NUM_CLASSES], feats_p[:B, :HIDDEN]


# ----------------------------- reference (pure JAX, f32) -----------------------------
def reference_forward(x, conv_w, conv_b, fc_w, fc_b):
    y = jax.lax.conv_general_dilated(
        x, conv_w, window_strides=(1, 1), padding=((1, 1), (1, 1)),
        dimension_numbers=("NCHW", "OIHW", "NCHW"))
    y = jnp.maximum(y + conv_b.reshape(1, HIDDEN, 1, 1), 0.0)
    feats = jnp.mean(y, axis=(2, 3))                               # [B, HIDDEN]
    logits = feats @ fc_w.T + fc_b                                 # [B, NUM_CLASSES]
    return logits, feats


# ----------------------------- main -----------------------------
if __name__ == "__main__":
    key = jax.random.PRNGKey(0)
    kx, kw1, kb1, kw2, kb2 = jax.random.split(key, 5)

    x = jax.random.normal(kx, (B, C_IN, H, W), dtype=jnp.float32)
    conv_w = 0.1 * jax.random.normal(kw1, (HIDDEN, C_IN, K, K), dtype=jnp.float32)
    conv_b = 0.05 * jax.random.normal(kb1, (HIDDEN,), dtype=jnp.float32)
    fc_w = 0.1 * jax.random.normal(kw2, (NUM_CLASSES, HIDDEN), dtype=jnp.float32)
    fc_b = 0.05 * jax.random.normal(kb2, (NUM_CLASSES,), dtype=jnp.float32)

    logits, feats = adversarial_forward(x, conv_w, conv_b, fc_w, fc_b)
    jax.block_until_ready((logits, feats))

    ref_logits, ref_feats = reference_forward(x, conv_w, conv_b, fc_w, fc_b)
    # bf16 MXU inputs (f32 accumulation) -> loosened tolerance vs pure f32.
    assert jnp.allclose(feats, ref_feats, atol=1e-2, rtol=1e-2), "features mismatch"
    assert jnp.allclose(logits, ref_logits, atol=1e-2, rtol=1e-2), "logits mismatch"

    print("KERNEL_OK")
</pallas_src>

<mosaic_0001>
module attributes {stable_mosaic.version = 11 : i64} {
  func.func @adversarial_kernel(%arg0: memref<512x36xbf16, #tpu.memory_space<vmem>>, %arg1: memref<36x128xbf16, #tpu.memory_space<vmem>>, %arg2: memref<1x128xf32, #tpu.memory_space<vmem>>, %arg3: memref<8x512xbf16, #tpu.memory_space<vmem>>, %arg4: memref<128x128xbf16, #tpu.memory_space<vmem>>, %arg5: memref<1x128xf32, #tpu.memory_space<vmem>>, %arg6: memref<8x128xf32, #tpu.memory_space<vmem>>, %arg7: memref<8x128xf32, #tpu.memory_space<vmem>>) attributes {dimension_semantics = [], scalar_prefetch = 0 : i64, scratch_operands = 0 : i64, tpu.core_type = #tpu.core_type<tc>} {
    %c0 = arith.constant 0 : index
    %c0_0 = arith.constant 0 : index
    %0 = vector.load %arg1[%c0, %c0_0] : memref<36x128xbf16, #tpu.memory_space<vmem>>, vector<36x128xbf16>
    %c0_1 = arith.constant 0 : index
    %c0_2 = arith.constant 0 : index
    %1 = vector.load %arg2[%c0_1, %c0_2] : memref<1x128xf32, #tpu.memory_space<vmem>>, vector<1x128xf32>
    %cst = arith.constant 0.000000e+00 : f32
    %2 = vector.broadcast %cst : f32 to vector<8x128xf32>
    %c0_3 = arith.constant 0 : index
    %c0_4 = arith.constant 0 : index
    %3 = vector.load %arg0[%c0_3, %c0_4] : memref<512x36xbf16, #tpu.memory_space<vmem>>, vector<128x36xbf16>
    %cst_5 = arith.constant dense<0.000000e+00> : vector<128x128xf32>
    %4 = tpu.matmul %3, %0, %cst_5 {dimension_numbers = #tpu.dot_dimension_numbers<[1], [0], [0], [1], [0, 0, 1, 1], [], []>} : vector<128x36xbf16>, vector<36x128xbf16>, vector<128x128xf32> -> vector<128x128xf32>
    %5 = vector.broadcast %1 : vector<1x128xf32> to vector<128x128xf32>
    %6 = arith.addf %4, %5 : vector<128x128xf32>
    %cst_6 = arith.constant 0.000000e+00 : f32
    %7 = vector.broadcast %cst_6 : f32 to vector<128x128xf32>
    %8 = arith.maximumf %6, %7 : vector<128x128xf32>
    %c0_7 = arith.constant 0 : index
    %c0_8 = arith.constant 0 : index
    %9 = vector.load %arg3[%c0_7, %c0_8] : memref<8x512xbf16, #tpu.memory_space<vmem>>, vector<8x128xbf16>
    %10 = arith.truncf %8 : vector<128x128xf32> to vector<128x128xbf16>
    %cst_9 = arith.constant dense<0.000000e+00> : vector<8x128xf32>
    %11 = tpu.matmul %9, %10, %cst_9 {dimension_numbers = #tpu.dot_dimension_numbers<[1], [0], [0], [1], [0, 0, 1, 1], [], []>} : vector<8x128xbf16>, vector<128x128xbf16>, vector<8x128xf32> -> vector<8x128xf32>
    %12 = arith.addf %2, %11 : vector<8x128xf32>
    %c128 = arith.constant 128 : index
    %c0_10 = arith.constant 0 : index
    %13 = vector.load %arg0[%c128, %c0_10] : memref<512x36xbf16, #tpu.memory_space<vmem>>, vector<128x36xbf16>
    %cst_11 = arith.constant dense<0.000000e+00> : vector<128x128xf32>
    %14 = tpu.matmul %13, %0, %cst_11 {dimension_numbers = #tpu.dot_dimension_numbers<[1], [0], [0], [1], [0, 0, 1, 1], [], []>} : vector<128x36xbf16>, vector<36x128xbf16>, vector<128x128xf32> -> vector<128x128xf32>
    %15 = vector.broadcast %1 : vector<1x128xf32> to vector<128x128xf32>
    %16 = arith.addf %14, %15 : vector<128x128xf32>
    %cst_12 = arith.constant 0.000000e+00 : f32
    %17 = vector.broadcast %cst_12 : f32 to vector<128x128xf32>
    %18 = arith.maximumf %16, %17 : vector<128x128xf32>
    %c0_13 = arith.constant 0 : index
    %c128_14 = arith.constant 128 : index
    %19 = vector.load %arg3[%c0_13, %c128_14] : memref<8x512xbf16, #tpu.memory_space<vmem>>, vector<8x128xbf16>
    %20 = arith.truncf %18 : vector<128x128xf32> to vector<128x128xbf16>
    %cst_15 = arith.constant dense<0.000000e+00> : vector<8x128xf32>
    %21 = tpu.matmul %19, %20, %cst_15 {dimension_numbers = #tpu.dot_dimension_numbers<[1], [0], [0], [1], [0, 0, 1, 1], [], []>} : vector<8x128xbf16>, vector<128x128xbf16>, vector<8x128xf32> -> vector<8x128xf32>
    %22 = arith.addf %12, %21 : vector<8x128xf32>
    %c256 = arith.constant 256 : index
    %c0_16 = arith.constant 0 : index
    %23 = vector.load %arg0[%c256, %c0_16] : memref<512x36xbf16, #tpu.memory_space<vmem>>, vector<128x36xbf16>
    %cst_17 = arith.constant dense<0.000000e+00> : vector<128x128xf32>
    %24 = tpu.matmul %23, %0, %cst_17 {dimension_numbers = #tpu.dot_dimension_numbers<[1], [0], [0], [1], [0, 0, 1, 1], [], []>} : vector<128x36xbf16>, vector<36x128xbf16>, vector<128x128xf32> -> vector<128x128xf32>
    %25 = vector.broadcast %1 : vector<1x128xf32> to vector<128x128xf32>
    %26 = arith.addf %24, %25 : vector<128x128xf32>
    %cst_18 = arith.constant 0.000000e+00 : f32
    %27 = vector.broadcast %cst_18 : f32 to vector<128x128xf32>
    %28 = arith.maximumf %26, %27 : vector<128x128xf32>
    %c0_19 = arith.constant 0 : index
    %c256_20 = arith.constant 256 : index
    %29 = vector.load %arg3[%c0_19, %c256_20] : memref<8x512xbf16, #tpu.memory_space<vmem>>, vector<8x128xbf16>
    %30 = arith.truncf %28 : vector<128x128xf32> to vector<128x128xbf16>
    %cst_21 = arith.constant dense<0.000000e+00> : vector<8x128xf32>
    %31 = tpu.matmul %29, %30, %cst_21 {dimension_numbers = #tpu.dot_dimension_numbers<[1], [0], [0], [1], [0, 0, 1, 1], [], []>} : vector<8x128xbf16>, vector<128x128xbf16>, vector<8x128xf32> -> vector<8x128xf32>
    %32 = arith.addf %22, %31 : vector<8x128xf32>
    %c384 = arith.constant 384 : index
    %c0_22 = arith.constant 0 : index
    %33 = vector.load %arg0[%c384, %c0_22] : memref<512x36xbf16, #tpu.memory_space<vmem>>, vector<128x36xbf16>
    %cst_23 = arith.constant dense<0.000000e+00> : vector<128x128xf32>
    %34 = tpu.matmul %33, %0, %cst_23 {dimension_numbers = #tpu.dot_dimension_numbers<[1], [0], [0], [1], [0, 0, 1, 1], [], []>} : vector<128x36xbf16>, vector<36x128xbf16>, vector<128x128xf32> -> vector<128x128xf32>
    %35 = vector.broadcast %1 : vector<1x128xf32> to vector<128x128xf32>
    %36 = arith.addf %34, %35 : vector<128x128xf32>
    %cst_24 = arith.constant 0.000000e+00 : f32
    %37 = vector.broadcast %cst_24 : f32 to vector<128x128xf32>
    %38 = arith.maximumf %36, %37 : vector<128x128xf32>
    %c0_25 = arith.constant 0 : index
    %c384_26 = arith.constant 384 : index
    %39 = vector.load %arg3[%c0_25, %c384_26] : memref<8x512xbf16, #tpu.memory_space<vmem>>, vector<8x128xbf16>
    %40 = arith.truncf %38 : vector<128x128xf32> to vector<128x128xbf16>
    %cst_27 = arith.constant dense<0.000000e+00> : vector<8x128xf32>
    %41 = tpu.matmul %39, %40, %cst_27 {dimension_numbers = #tpu.dot_dimension_numbers<[1], [0], [0], [1], [0, 0, 1, 1], [], []>} : vector<8x128xbf16>, vector<128x128xbf16>, vector<8x128xf32> -> vector<8x128xf32>
    %42 = arith.addf %32, %41 : vector<8x128xf32>
    %c0_28 = arith.constant 0 : index
    %c0_29 = arith.constant 0 : index
    %43 = vector.load %arg7[%c0_28, %c0_29] : memref<8x128xf32, #tpu.memory_space<vmem>>, vector<8x128xf32>
    tpu.vector_store %arg7[%c0_28, %c0_29], %42 {strides = array<i32>} : memref<8x128xf32, #tpu.memory_space<vmem>>, vector<8x128xf32>,
    %44 = arith.truncf %42 : vector<8x128xf32> to vector<8x128xbf16>
    %c0_30 = arith.constant 0 : index
    %c0_31 = arith.constant 0 : index
    %45 = vector.load %arg4[%c0_30, %c0_31] : memref<128x128xbf16, #tpu.memory_space<vmem>>, vector<128x128xbf16>
    %cst_32 = arith.constant dense<0.000000e+00> : vector<8x128xf32>
    %46 = tpu.matmul %44, %45, %cst_32 {dimension_numbers = #tpu.dot_dimension_numbers<[1], [0], [0], [1], [0, 0, 1, 1], [], []>} : vector<8x128xbf16>, vector<128x128xbf16>, vector<8x128xf32> -> vector<8x128xf32>
    %c0_33 = arith.constant 0 : index
    %c0_34 = arith.constant 0 : index
    %47 = vector.load %arg5[%c0_33, %c0_34] : memref<1x128xf32, #tpu.memory_space<vmem>>, vector<1x128xf32>
    %48 = vector.broadcast %47 : vector<1x128xf32> to vector<8x128xf32>
    %49 = arith.addf %46, %48 : vector<8x128xf32>
    %c0_35 = arith.constant 0 : index
    %c0_36 = arith.constant 0 : index
    %50 = vector.load %arg6[%c0_35, %c0_36] : memref<8x128xf32, #tpu.memory_space<vmem>>, vector<8x128xf32>
    tpu.vector_store %arg6[%c0_35, %c0_36], %49 {strides = array<i32>} : memref<8x128xf32, #tpu.memory_space<vmem>>, vector<8x128xf32>,
    return
  }
}

</mosaic_0001>

<llo_original>
// kernel: adversarial_forward.1
$region0: #{adversarial_forward.1}
  #allocation0 [shape = 'u32[]', space=smem, size = 0x4, offset = 0x4, fixed_abs, tag = 'smem constant byte address 0x4 - core index']
  #allocation1 [shape = 'u32[144,128]{1,0:T(1,128)}', space=vmem, size = 0x12000, scoped, tag = 'internal scratch']
  %s0 = inlined_call_operand.vmem [shape: bf16[512,36], index: 0, kind: input, shape index: {}]
  %s1 = inlined_call_operand.vmem [shape: bf16[36,128], index: 1, kind: input, shape index: {}]
  %s2 = inlined_call_operand.vmem [shape: f32[1,128], index: 2, kind: input, shape index: {}]
  %s3 = inlined_call_operand.vmem [shape: bf16[8,512], index: 3, kind: input, shape index: {}]
  %s4 = inlined_call_operand.vmem [shape: bf16[128,128], index: 4, kind: input, shape index: {}]
  %s5 = inlined_call_operand.vmem [shape: f32[1,128], index: 5, kind: input, shape index: {}]
  %s6 = inlined_call_operand.vmem [shape: f32[8,128], index: 6, kind: output, shape index: {0}]
  %s7 = inlined_call_operand.vmem [shape: f32[8,128], index: 7, kind: output, shape index: {1}]
  %8 = xla_tuple %s6, %s7
  %s9 = sld [smem:[#allocation0]]
  $region42: #{adversarial_forward.1} parent=0
    _
  %s11 = ssub.s32 1, %s9
  %s12 = scalar_select 0, %s11, %s9
  // Predicated region
  $region2: #{adversarial_forward.1} parent=0 // pred_check
    _
  $region3: #{adversarial_forward.1} parent=0 // pred_check_branch
    %14 = sbr.rel (0) target = $region5
  $region4: #{adversarial_forward.1} parent=0 // pred_region
    _
  $region5: #{adversarial_forward.1} parent=0 // pred_fallthru
    _
  // Predicated region
  $region6: #{adversarial_forward.1} parent=0 // pred_check
    _
  $region7: #{adversarial_forward.1} parent=0 // pred_check_branch
    %16 = sbr.rel (0) target = $region9
  $region8: #{adversarial_forward.1} parent=0 // pred_region
    _
  $region9: #{adversarial_forward.1} parent=0 // pred_fallthru
    _
  // Predicated region
  $region10: #{adversarial_forward.1} parent=0 // pred_check
    _
  $region11: #{adversarial_forward.1} parent=0 // pred_check_branch
    %18 = sbr.rel (0) target = $region13
  $region12: #{adversarial_forward.1} parent=0 // pred_region
    _
  $region13: #{adversarial_forward.1} parent=0 // pred_fallthru
    _
  // Predicated region
  $region14: #{adversarial_forward.1} parent=0 // pred_check
    _
  $region15: #{adversarial_forward.1} parent=0 // pred_check_branch
    %20 = sbr.rel (0) target = $region17
  $region16: #{adversarial_forward.1} parent=0 // pred_region
    _
  $region17: #{adversarial_forward.1} parent=0 // pred_fallthru
    _
  // Predicated region
  $region18: #{adversarial_forward.1} parent=0 // pred_check
    _
  $region19: #{adversarial_forward.1} parent=0 // pred_check_branch
    %22 = sbr.rel (0) target = $region21
  $region20: #{adversarial_forward.1} parent=0 // pred_region
    _
  $region21: #{adversarial_forward.1} parent=0 // pred_fallthru
    _
  // Predicated region
  $region22: #{adversarial_forward.1} parent=0 // pred_check
    _
  $region23: #{adversarial_forward.1} parent=0 // pred_check_branch
    %24 = sbr.rel (0) target = $region25
  $region24: #{adversarial_forward.1} parent=0 // pred_region
    _
  $region25: #{adversarial_forward.1} parent=0 // pred_fallthru
    _
  %v26 = vld [vmem:[%s1] sm:$0xf]
  %v27 = vld [vmem:[%s1 + $0x4] sm:$0xf]
  %v28 = vld [vmem:[%s1 + $0x8] sm:$0xf]
  %v29 = vld [vmem:[%s1 + $0xc] sm:$0xf]
  %v30 = vld [vmem:[%s1 + $0x10] sm:$0x3]
  %v31 = vld [vmem:[%s2] sm:$0x1]
  %v32 = vld [vmem:[%s0] sm:$0xf]
  %v33 = vld [vmem:[%s0 + $0x4] sm:$0xf]
  %v34 = vld [vmem:[%s0 + $0x8] sm:$0xf]
  %v35 = vld [vmem:[%s0 + $0xc] sm:$0xf]
  %v36 = vld [vmem:[%s0 + $0x10] sm:$0xf]
  %v37 = vld [vmem:[%s0 + $0x14] sm:$0xf]
  %v38 = vld [vmem:[%s0 + $0x18] sm:$0xf]
  %v39 = vld [vmem:[%s0 + $0x1c] sm:$0xf]
  %v40 = vld [vmem:[%s0 + $0x20] sm:$0xf]
  %v41 = vld [vmem:[%s0 + $0x24] sm:$0xf]
  %v42 = vld [vmem:[%s0 + $0x28] sm:$0xf]
  %v43 = vld [vmem:[%s0 + $0x2c] sm:$0xf]
  %v44 = vld [vmem:[%s0 + $0x30] sm:$0xf]
  %v45 = vld [vmem:[%s0 + $0x34] sm:$0xf]
  %v46 = vld [vmem:[%s0 + $0x38] sm:$0xf]
  %v47 = vld [vmem:[%s0 + $0x3c] sm:$0xf]
  %v49 = vlaneseq
  %v50 = vshrl.u32 %v49, 7
  %v51 = vsub.s32 0, %v50
  %v52 = vrot.slane %v31, %v51
  %v70 = vunpack.c.l.b16 %v32
  %v71 = vunpack.c.l.b16 %v33
  %v72 = vunpack.c.l.b16 %v34
  %v73 = vunpack.c.l.b16 %v35
  %v74 = vunpack.c.l.b16 %v36
  %v75 = vunpack.c.l.b16 %v37
  %v76 = vunpack.c.l.b16 %v38
  %v77 = vunpack.c.l.b16 %v39
  %v78 = vunpack.c.l.b16 %v40
  %v79 = vunpack.c.l.b16 %v41
  %v80 = vunpack.c.l.b16 %v42
  %v81 = vunpack.c.l.b16 %v43
  %v82 = vunpack.c.l.b16 %v44
  %v83 = vunpack.c.l.b16 %v45
  %v84 = vunpack.c.l.b16 %v46
  %v85 = vunpack.c.l.b16 %v47
  %v86 = vpack.c.b16 %v71, %v70
  %v87 = vpack.c.b16 %v73, %v72
  %v88 = vpack.c.b16 %v75, %v74
  %v89 = vpack.c.b16 %v77, %v76
  %v90 = vpack.c.b16 %v79, %v78
  %v91 = vpack.c.b16 %v81, %v80
  %v92 = vpack.c.b16 %v83, %v82
  %v93 = vpack.c.b16 %v85, %v84
  %v99 = vunpack.c.l.b16 %v26
  %v100 = vunpack.c.l.b16 %v27
  %v101 = vunpack.c.l.b16 %v28
  %v102 = vunpack.c.l.b16 %v29
  %v103 = vunpack.c.l.b16 %v30
  %v104 = vpack.c.b16 %v100, %v99
  %v105 = vpack.c.b16 %v102, %v101
  %v106 = vpack.c.b16 %v103, %v103
  %vm109 = vcmask 293888
  %v111 = vsel %vm109, %v86, 0
  %v114 = vsel %vm109, %v87, 0
  %v117 = vsel %vm109, %v88, 0
  %v120 = vsel %vm109, %v89, 0
  %v123 = vsel %vm109, %v90, 0
  %v126 = vsel %vm109, %v91, 0
  %v129 = vsel %vm109, %v92, 0
  %v132 = vsel %vm109, %v93, 0
  %vm134 = vcmask 1041408
  %v136 = vsel %vm134, %v106, 0
  %138 = vmatprep.subr.bf16.mxu0 0
  %139 = vmatpush1.bf16.msra.mxu0 %v104
  %140 = vmatprep.subr.bf16.mxu0 0
  %141 = vmatpush1.bf16.msra.mxu0 %v105
  %142 = vmatprep.subr.bf16.mxu0 0
  %143 = vmatpush1.bf16.msra.mxu0 %v136
  %144 = vmatprep.subr.bf16.mxu0 0
  %145 = vmatpush1.bf16.msra.mxu0 0
  %146 = vmatprep.subr.bf16.mxu0 0
  %147 = vmatpush1.bf16.msra.mxu0 0
  %148 = vmatprep.subr.bf16.mxu0 0
  %149 = vmatpush1.bf16.msra.mxu0 0
  %150 = vmatprep.subr.bf16.mxu0 0
  %151 = vmatpush1.bf16.msra.mxu0 0
  %152 = vmatprep.subr.bf16.mxu0 0
  %153 = vmatpush1.bf16.msra.mxu0 0
  %154 = vmatprep.subr.bf16.mxu0 0
  %155 = vmatpush1.bf16.msra.mxu0 0
  %156 = vmatprep.subr.bf16.mxu0 0
  %157 = vmatpush1.bf16.msra.mxu0 0
  %158 = vmatprep.subr.bf16.mxu0 0
  %159 = vmatpush1.bf16.msra.mxu0 0
  %160 = vmatprep.subr.bf16.mxu0 0
  %161 = vmatpush1.bf16.msra.mxu0 0
  %162 = vmatprep.subr.bf16.mxu0 0
  %163 = vmatpush1.bf16.msra.mxu0 0
  %164 = vmatprep.subr.bf16.mxu0 0
  %165 = vmatpush1.bf16.msra.mxu0 0
  %166 = vmatprep.subr.bf16.mxu0 0
  %167 = vmatpush1.bf16.msra.mxu0 0
  %168 = vmatprep.subr.bf16.mxu0 0
  %169 = vmatpush1.bf16.msra.mxu0 0
  %170 = vmatprep.mubr.bf16.mxu0 0
  %171 = vmatmul.mubr.bf16.gmra.mrb[0].mxu0 %v111
  %v172 = vpop.f32.mrb[0].mxu0
  %v173 = vadd.f32 %v52, %v172
  %v174 = vpop.f32.mrb[0].mxu0
  %v175 = vpop.f32.mrb[0].mxu0
  %v176 = vadd.f32 %v52, %v175
  %v177 = vpop.f32.mrb[0].mxu0
  %178 = vmatprep.mubr.bf16.mxu0 0
  %179 = vmatmul.mubr.bf16.gmra.mrb[0].mxu0 %v114
  %v180 = vpop.f32.mrb[0].mxu0
  %v181 = vadd.f32 %v52, %v180
  %v182 = vpop.f32.mrb[0].mxu0
  %v183 = vpop.f32.mrb[0].mxu0
  %v184 = vadd.f32 %v52, %v183
  %v185 = vpop.f32.mrb[0].mxu0
  %186 = vmatprep.mubr.bf16.mxu0 0
  %187 = vmatmul.mubr.bf16.gmra.mrb[0].mxu0 %v117
  %v188 = vpop.f32.mrb[0].mxu0
  %v189 = vadd.f32 %v52, %v188
  %v190 = vpop.f32.mrb[0].mxu0
  %v191 = vpop.f32.mrb[0].mxu0
  %v192 = vadd.f32 %v52, %v191
  %v193 = vpop.f32.mrb[0].mxu0
  %194 = vmatprep.mubr.bf16.mxu0 0
  %195 = vmatmul.mubr.bf16.gmra.mrb[0].mxu0 %v120
  %v196 = vpop.f32.mrb[0].mxu0
  %v197 = vadd.f32 %v52, %v196
  %v198 = vpop.f32.mrb[0].mxu0
  %v199 = vpop.f32.mrb[0].mxu0
  %v200 = vadd.f32 %v52, %v199
  %v201 = vpop.f32.mrb[0].mxu0
  %202 = vmatprep.mubr.bf16.mxu0 0
  %203 = vmatmul.mubr.bf16.gmra.mrb[0].mxu0 %v123
  %v204 = vpop.f32.mrb[0].mxu0
  %v205 = vadd.f32 %v52, %v204
  %v206 = vpop.f32.mrb[0].mxu0
  %v207 = vpop.f32.mrb[0].mxu0
  %v208 = vadd.f32 %v52, %v207
  %v209 = vpop.f32.mrb[0].mxu0
  %210 = vmatprep.mubr.bf16.mxu0 0
  %211 = vmatmul.mubr.bf16.gmra.mrb[0].mxu0 %v126
  %v212 = vpop.f32.mrb[0].mxu0
  %v213 = vadd.f32 %v52, %v212
  %v214 = vpop.f32.mrb[0].mxu0
  %v215 = vpop.f32.mrb[0].mxu0
  %v216 = vadd.f32 %v52, %v215
  %v217 = vpop.f32.mrb[0].mxu0
  %218 = vmatprep.mubr.bf16.mxu0 0
  %219 = vmatmul.mubr.bf16.gmra.mrb[0].mxu0 %v129
  %v220 = vpop.f32.mrb[0].mxu0
  %v221 = vadd.f32 %v52, %v220
  %v222 = vpop.f32.mrb[0].mxu0
  %v223 = vpop.f32.mrb[0].mxu0
  %v224 = vadd.f32 %v52, %v223
  %v225 = vpop.f32.mrb[0].mxu0
  %226 = vmatprep.mubr.bf16.mxu0 0
  %227 = vmatmul.mubr.bf16.gmra.mrb[0].mxu0 %v132
  %v228 = vpop.f32.mrb[0].mxu0
  %v229 = vadd.f32 %v52, %v228
  %v230 = vpop.f32.mrb[0].mxu0
  %v231 = vpop.f32.mrb[0].mxu0
  %v232 = vadd.f32 %v52, %v231
  %v233 = vpop.f32.mrb[0].mxu0
  %234 = vdwg.mxu0
  %v235 = vmax.f32 %v173, 0.0
  %v236 = vmax.f32 %v176, 0.0
  %v237 = vmax.f32 %v181, 0.0
  %v238 = vmax.f32 %v184, 0.0
  %v239 = vmax.f32 %v189, 0.0
  %v240 = vmax.f32 %v192, 0.0
  %v241 = vmax.f32 %v197, 0.0
  %v242 = vmax.f32 %v200, 0.0
  %v243 = vmax.f32 %v205, 0.0
  %v244 = vmax.f32 %v208, 0.0
  %v245 = vmax.f32 %v213, 0.0
  %v246 = vmax.f32 %v216, 0.0
  %v247 = vmax.f32 %v221, 0.0
  %v248 = vmax.f32 %v224, 0.0
  %v249 = vmax.f32 %v229, 0.0
  %v250 = vmax.f32 %v232, 0.0
  %v251 = vld [vmem:[%s3] sm:$0xf]
  %v252 = vpack.c.bf16 %v236, %v235
  %v253 = vpack.c.bf16 %v238, %v237
  %v254 = vpack.c.bf16 %v240, %v239
  %v255 = vpack.c.bf16 %v242, %v241
  %v256 = vpack.c.bf16 %v244, %v243
  %v257 = vpack.c.bf16 %v246, %v245
  %v258 = vpack.c.bf16 %v248, %v247
  %v259 = vpack.c.bf16 %v250, %v249
  %v260 = vld [vmem:[%s0 + $0x40] sm:$0xf]
  %v261 = vld [vmem:[%s0 + $0x44] sm:$0xf]
  %v262 = vld [vmem:[%s0 + $0x48] sm:$0xf]
  %v263 = vld [vmem:[%s0 + $0x4c] sm:$0xf]
  %v264 = vld [vmem:[%s0 + $0x50] sm:$0xf]
  %v265 = vld [vmem:[%s0 + $0x54] sm:$0xf]
  %v266 = vld [vmem:[%s0 + $0x58] sm:$0xf]
  %v267 = vld [vmem:[%s0 + $0x5c] sm:$0xf]
  %v268 = vld [vmem:[%s0 + $0x60] sm:$0xf]
  %v269 = vld [vmem:[%s0 + $0x64] sm:$0xf]
  %v270 = vld [vmem:[%s0 + $0x68] sm:$0xf]
  %v271 = vld [vmem:[%s0 + $0x6c] sm:$0xf]
  %v272 = vld [vmem:[%s0 + $0x70] sm:$0xf]
  %v273 = vld [vmem:[%s0 + $0x74] sm:$0xf]
  %v274 = vld [vmem:[%s0 + $0x78] sm:$0xf]
  %v275 = vld [vmem:[%s0 + $0x7c] sm:$0xf]
  %v292 = vunpack.c.l.b16 %v260
  %v293 = vunpack.c.l.b16 %v261
  %v294 = vunpack.c.l.b16 %v262
  %v295 = vunpack.c.l.b16 %v263
  %v296 = vunpack.c.l.b16 %v264
  %v297 = vunpack.c.l.b16 %v265
  %v298 = vunpack.c.l.b16 %v266
  %v299 = vunpack.c.l.b16 %v267
  %v300 = vunpack.c.l.b16 %v268
  %v301 = vunpack.c.l.b16 %v269
  %v302 = vunpack.c.l.b16 %v270
  %v303 = vunpack.c.l.b16 %v271
  %v304 = vunpack.c.l.b16 %v272
  %v305 = vunpack.c.l.b16 %v273
  %v306 = vunpack.c.l.b16 %v274
  %v307 = vunpack.c.l.b16 %v275
  %v308 = vpack.c.b16 %v293, %v292
  %v309 = vpack.c.b16 %v295, %v294
  %v310 = vpack.c.b16 %v297, %v296
  %v311 = vpack.c.b16 %v299, %v298
  %v312 = vpack.c.b16 %v301, %v300
  %v313 = vpack.c.b16 %v303, %v302
  %v314 = vpack.c.b16 %v305, %v304
  %v315 = vpack.c.b16 %v307, %v306
  %v317 = vsel %vm109, %v308, 0
  %v320 = vsel %vm109, %v309, 0
  %v323 = vsel %vm109, %v310, 0
  %v326 = vsel %vm109, %v311, 0
  %v329 = vsel %vm109, %v312, 0
  %v332 = vsel %vm109, %v313, 0
  %v335 = vsel %vm109, %v314, 0
  %v338 = vsel %vm109, %v315, 0
  %340 = vmatprep.subr.bf16.mxu0 0
  %341 = vmatpush1.bf16.msra.mxu0 %v104
  %342 = vmatprep.subr.bf16.mxu0 0
  %343 = vmatpush1.bf16.msra.mxu0 %v105
  %344 = vmatprep.subr.bf16.mxu0 0
  %345 = vmatpush1.bf16.msra.mxu0 %v136
  %346 = vmatprep.subr.bf16.mxu0 0
  %347 = vmatpush1.bf16.msra.mxu0 0
  %348 = vmatprep.subr.bf16.mxu0 0
  %349 = vmatpush1.bf16.msra.mxu0 0
  %350 = vmatprep.subr.bf16.mxu0 0
  %351 = vmatpush1.bf16.msra.mxu0 0
  %352 = vmatprep.subr.bf16.mxu0 0
  %353 = vmatpush1.bf16.msra.mxu0 0
  %354 = vmatprep.subr.bf16.mxu0 0
  %355 = vmatpush1.bf16.msra.mxu0 0
  %356 = vmatprep.subr.bf16.mxu0 0
  %357 = vmatpush1.bf16.msra.mxu0 0
  %358 = vmatprep.subr.bf16.mxu0 0
  %359 = vmatpush1.bf16.msra.mxu0 0
  %360 = vmatprep.subr.bf16.mxu0 0
  %361 = vmatpush1.bf16.msra.mxu0 0
  %362 = vmatprep.subr.bf16.mxu0 0
  %363 = vmatpush1.bf16.msra.mxu0 0
  %364 = vmatprep.subr.bf16.mxu0 0
  %365 = vmatpush1.bf16.msra.mxu0 0
  %366 = vmatprep.subr.bf16.mxu0 0
  %367 = vmatpush1.bf16.msra.mxu0 0
  %368 = vmatprep.subr.bf16.mxu0 0
  %369 = vmatpush1.bf16.msra.mxu0 0
  %370 = vmatprep.subr.bf16.mxu0 0
  %371 = vmatpush1.bf16.msra.mxu0 0
  %372 = vmatprep.mubr.bf16.mxu0 0
  %373 = vmatmul.mubr.bf16.gmra.mrb[0].mxu0 %v317
  %v374 = vpop.f32.mrb[0].mxu0
  %v375 = vadd.f32 %v52, %v374
  %v376 = vpop.f32.mrb[0].mxu0
  %v377 = vpop.f32.mrb[0].mxu0
  %v378 = vadd.f32 %v52, %v377
  %v379 = vpop.f32.mrb[0].mxu0
  %380 = vmatprep.mubr.bf16.mxu0 0
  %381 = vmatmul.mubr.bf16.gmra.mrb[0].mxu0 %v320
  %v382 = vpop.f32.mrb[0].mxu0
  %v383 = vadd.f32 %v52, %v382
  %v384 = vpop.f32.mrb[0].mxu0
  %v385 = vpop.f32.mrb[0].mxu0
  %v386 = vadd.f32 %v52, %v385
  %v387 = vpop.f32.mrb[0].mxu0
  %388 = vmatprep.mubr.bf16.mxu0 0
  %389 = vmatmul.mubr.bf16.gmra.mrb[0].mxu0 %v323
  %v390 = vpop.f32.mrb[0].mxu0
  %v391 = vadd.f32 %v52, %v390
  %v392 = vpop.f32.mrb[0].mxu0
  %v393 = vpop.f32.mrb[0].mxu0
  %v394 = vadd.f32 %v52, %v393
  %v395 = vpop.f32.mrb[0].mxu0
  %396 = vmatprep.mubr.bf16.mxu0 0
  %397 = vmatmul.mubr.bf16.gmra.mrb[0].mxu0 %v326
  %v398 = vpop.f32.mrb[0].mxu0
  %v399 = vadd.f32 %v52, %v398
  %v400 = vpop.f32.mrb[0].mxu0
  %v401 = vpop.f32.mrb[0].mxu0
  %v402 = vadd.f32 %v52, %v401
  %v403 = vpop.f32.mrb[0].mxu0
  %404 = vmatprep.mubr.bf16.mxu0 0
  %405 = vmatmul.mubr.bf16.gmra.mrb[0].mxu0 %v329
  %v406 = vpop.f32.mrb[0].mxu0
  %v407 = vadd.f32 %v52, %v406
  %v408 = vpop.f32.mrb[0].mxu0
  %v409 = vpop.f32.mrb[0].mxu0
  %v410 = vadd.f32 %v52, %v409
  %v411 = vpop.f32.mrb[0].mxu0
  %412 = vmatprep.mubr.bf16.mxu0 0
  %413 = vmatmul.mubr.bf16.gmra.mrb[0].mxu0 %v332
  %v414 = vpop.f32.mrb[0].mxu0
  %v415 = vadd.f32 %v52, %v414
  %v416 = vpop.f32.mrb[0].mxu0
  %v417 = vpop.f32.mrb[0].mxu0
  %v418 = vadd.f32 %v52, %v417
  %v419 = vpop.f32.mrb[0].mxu0
  %420 = vmatprep.mubr.bf16.mxu0 0
  %421 = vmatmul.mubr.bf16.gmra.mrb[0].mxu0 %v335
  %v422 = vpop.f32.mrb[0].mxu0
  %v423 = vadd.f32 %v52, %v422
  %v424 = vpop.f32.mrb[0].mxu0
  %v425 = vpop.f32.mrb[0].mxu0
  %v426 = vadd.f32 %v52, %v425
  %v427 = vpop.f32.mrb[0].mxu0
  %428 = vmatprep.mubr.bf16.mxu0 0
  %429 = vmatmul.mubr.bf16.gmra.mrb[0].mxu0 %v338
  %v430 = vpop.f32.mrb[0].mxu0
  %v431 = vadd.f32 %v52, %v430
  %v432 = vpop.f32.mrb[0].mxu0
  %v433 = vpop.f32.mrb[0].mxu0
  %v434 = vadd.f32 %v52, %v433
  %v435 = vpop.f32.mrb[0].mxu0
  %436 = vdwg.mxu0
  %v437 = vmax.f32 %v375, 0.0
  %v438 = vmax.f32 %v378, 0.0
  %v439 = vmax.f32 %v383, 0.0
  %v440 = vmax.f32 %v386, 0.0
  %v441 = vmax.f32 %v391, 0.0
  %v442 = vmax.f32 %v394, 0.0
  %v443 = vmax.f32 %v399, 0.0
  %v444 = vmax.f32 %v402, 0.0
  %v445 = vmax.f32 %v407, 0.0
  %v446 = vmax.f32 %v410, 0.0
  %v447 = vmax.f32 %v415, 0.0
  %v448 = vmax.f32 %v418, 0.0
  %v449 = vmax.f32 %v423, 0.0
  %v450 = vmax.f32 %v426, 0.0
  %v451 = vmax.f32 %v431, 0.0
  %v452 = vmax.f32 %v434, 0.0
  %v453 = vld [vmem:[%s3 + $0x4] sm:$0xf]
  %v454 = vpack.c.bf16 %v438, %v437
  %v455 = vpack.c.bf16 %v440, %v439
  %v456 = vpack.c.bf16 %v442, %v441
  %v457 = vpack.c.bf16 %v444, %v443
  %v458 = vpack.c.bf16 %v446, %v445
  %v459 = vpack.c.bf16 %v448, %v447
  %v460 = vpack.c.bf16 %v450, %v449
  %v461 = vpack.c.bf16 %v452, %v451
  %462 = vmatprep.subr.bf16.mxu0 0
  %463 = vmatpush1.bf16.msra.mxu0 %v454
  %464 = vmatprep.subr.bf16.mxu0 0
  %465 = vmatpush1.bf16.msra.mxu0 %v455
  %466 = vmatprep.subr.bf16.mxu0 0
  %467 = vmatpush1.bf16.msra.mxu0 %v456
  %468 = vmatprep.subr.bf16.mxu0 0
  %469 = vmatpush1.bf16.msra.mxu0 %v457
  %470 = vmatprep.subr.bf16.mxu0 0
  %471 = vmatpush1.bf16.msra.mxu0 %v458
  %472 = vmatprep.subr.bf16.mxu0 0
  %473 = vmatpush1.bf16.msra.mxu0 %v459
  %474 = vmatprep.subr.bf16.mxu0 0
  %475 = vmatpush1.bf16.msra.mxu0 %v460
  %476 = vmatprep.subr.bf16.mxu0 0
  %477 = vmatpush1.bf16.msra.mxu0 %v461
  %478 = vmatprep.subr.bf16.mxu0 0
  %479 = vmatpush1.bf16.msra.mxu0 0
  %480 = vmatprep.subr.bf16.mxu0 0
  %481 = vmatpush1.bf16.msra.mxu0 0
  %482 = vmatprep.subr.bf16.mxu0 0
  %483 = vmatpush1.bf16.msra.mxu0 0
  %484 = vmatprep.subr.bf16.mxu0 0
  %485 = vmatpush1.bf16.msra.mxu0 0
  %486 = vmatprep.subr.bf16.mxu0 0
  %487 = vmatpush1.bf16.msra.mxu0 0
  %488 = vmatprep.subr.bf16.mxu0 0
  %489 = vmatpush1.bf16.msra.mxu0 0
  %490 = vmatprep.subr.bf16.mxu0 0
  %491 = vmatpush1.bf16.msra.mxu0 0
  %492 = vmatprep.subr.bf16.mxu0 0
  %493 = vmatpush1.bf16.msra.mxu0 0
  %494 = vmatprep.mubr.bf16.mxu0 0
  %495 = vmatmul.mubr.bf16.gmra.mrb[0].mxu0 %v453
  %v496 = vpop.f32.mrb[0].mxu0
  %v497 = vadd.f32 0.0, %v496
  %v498 = vpop.f32.mrb[0].mxu0
  %v499 = vpop.f32.mrb[0].mxu0
  %v500 = vpop.f32.mrb[0].mxu0
  %501 = vdwg.mxu0
  %502 = vmatprep.subr.bf16.mxu0 0
  %503 = vmatpush1.bf16.msra.mxu0 %v252
  %504 = vmatprep.subr.bf16.mxu0 0
  %505 = vmatpush1.bf16.msra.mxu0 %v253
  %506 = vmatprep.subr.bf16.mxu0 0
  %507 = vmatpush1.bf16.msra.mxu0 %v254
  %508 = vmatprep.subr.bf16.mxu0 0
  %509 = vmatpush1.bf16.msra.mxu0 %v255
  %510 = vmatprep.subr.bf16.mxu0 0
  %511 = vmatpush1.bf16.msra.mxu0 %v256
  %512 = vmatprep.subr.bf16.mxu0 0
  %513 = vmatpush1.bf16.msra.mxu0 %v257
  %514 = vmatprep.subr.bf16.mxu0 0
  %515 = vmatpush1.bf16.msra.mxu0 %v258
  %516 = vmatprep.subr.bf16.mxu0 0
  %517 = vmatpush1.bf16.msra.mxu0 %v259
  %518 = vmatprep.subr.bf16.mxu0 0
  %519 = vmatpush1.bf16.msra.mxu0 0
  %520 = vmatprep.subr.bf16.mxu0 0
  %521 = vmatpush1.bf16.msra.mxu0 0
  %522 = vmatprep.subr.bf16.mxu0 0
  %523 = vmatpush1.bf16.msra.mxu0 0
  %524 = vmatprep.subr.bf16.mxu0 0
  %525 = vmatpush1.bf16.msra.mxu0 0
  %526 = vmatprep.subr.bf16.mxu0 0
  %527 = vmatpush1.bf16.msra.mxu0 0
  %528 = vmatprep.subr.bf16.mxu0 0
  %529 = vmatpush1.bf16.msra.mxu0 0
  %530 = vmatprep.subr.bf16.mxu0 0
  %531 = vmatpush1.bf16.msra.mxu0 0
  %532 = vmatprep.subr.bf16.mxu0 0
  %533 = vmatpush1.bf16.msra.mxu0 0
  %534 = vmatprep.mubr.bf16.mxu0 0
  %535 = vmatmul.mubr.bf16.gmra.mrb[0].mxu0 %v251
  %v536 = vpop.f32.mrb[0].mxu0
  %v537 = vadd.f32 %v497, %v536
  %v538 = vpop.f32.mrb[0].mxu0
  %v539 = vpop.f32.mrb[0].mxu0
  %v540 = vpop.f32.mrb[0].mxu0
  %541 = vdwg.mxu0
  %v542 = vld [vmem:[%s0 + $0x80] sm:$0xf]
  %v543 = vld [vmem:[%s0 + $0x84] sm:$0xf]
  %v544 = vld [vmem:[%s0 + $0x88] sm:$0xf]
  %v545 = vld [vmem:[%s0 + $0x8c] sm:$0xf]
  %v546 = vld [vmem:[%s0 + $0x90] sm:$0xf]
  %v547 = vld [vmem:[%s0 + $0x94] sm:$0xf]
  %v548 = vld [vmem:[%s0 + $0x98] sm:$0xf]
  %v549 = vld [vmem:[%s0 + $0x9c] sm:$0xf]
  %v550 = vld [vmem:[%s0 + $0xa0] sm:$0xf]
  %v551 = vld [vmem:[%s0 + $0xa4] sm:$0xf]
  %v552 = vld [vmem:[%s0 + $0xa8] sm:$0xf]
  %v553 = vld [vmem:[%s0 + $0xac] sm:$0xf]
  %v554 = vld [vmem:[%s0 + $0xb0] sm:$0xf]
  %v555 = vld [vmem:[%s0 + $0xb4] sm:$0xf]
  %v556 = vld [vmem:[%s0 + $0xb8] sm:$0xf]
  %v557 = vld [vmem:[%s0 + $0xbc] sm:$0xf]
  %v574 = vunpack.c.l.b16 %v542
  %v575 = vunpack.c.l.b16 %v543
  %v576 = vunpack.c.l.b16 %v544
  %v577 = vunpack.c.l.b16 %v545
  %v578 = vunpack.c.l.b16 %v546
  %v579 = vunpack.c.l.b16 %v547
  %v580 = vunpack.c.l.b16 %v548
  %v581 = vunpack.c.l.b16 %v549
  %v582 = vunpack.c.l.b16 %v550
  %v583 = vunpack.c.l.b16 %v551
  %v584 = vunpack.c.l.b16 %v552
  %v585 = vunpack.c.l.b16 %v553
  %v586 = vunpack.c.l.b16 %v554
  %v587 = vunpack.c.l.b16 %v555
  %v588 = vunpack.c.l.b16 %v556
  %v589 = vunpack.c.l.b16 %v557
  %v590 = vpack.c.b16 %v575, %v574
  %v591 = vpack.c.b16 %v577, %v576
  %v592 = vpack.c.b16 %v579, %v578
  %v593 = vpack.c.b16 %v581, %v580
  %v594 = vpack.c.b16 %v583, %v582
  %v595 = vpack.c.b16 %v585, %v584
  %v596 = vpack.c.b16 %v587, %v586
  %v597 = vpack.c.b16 %v589, %v588
  %v599 = vsel %vm109, %v590, 0
  %v602 = vsel %vm109, %v591, 0
  %v605 = vsel %vm109, %v592, 0
  %v608 = vsel %vm109, %v593, 0
  %v611 = vsel %vm109, %v594, 0
  %v614 = vsel %vm109, %v595, 0
  %v617 = vsel %vm109, %v596, 0
  %v620 = vsel %vm109, %v597, 0
  %622 = vmatprep.subr.bf16.mxu0 0
  %623 = vmatpush1.bf16.msra.mxu0 %v104
  %624 = vmatprep.subr.bf16.mxu0 0
  %625 = vmatpush1.bf16.msra.mxu0 %v105
  %626 = vmatprep.subr.bf16.mxu0 0
  %627 = vmatpush1.bf16.msra.mxu0 %v136
  %628 = vmatprep.subr.bf16.mxu0 0
  %629 = vmatpush1.bf16.msra.mxu0 0
  %630 = vmatprep.subr.bf16.mxu0 0
  %631 = vmatpush1.bf16.msra.mxu0 0
  %632 = vmatprep.subr.bf16.mxu0 0
  %633 = vmatpush1.bf16.msra.mxu0 0
  %634 = vmatprep.subr.bf16.mxu0 0
  %635 = vmatpush1.bf16.msra.mxu0 0
  %636 = vmatprep.subr.bf16.mxu0 0
  %637 = vmatpush1.bf16.msra.mxu0 0
  %638 = vmatprep.subr.bf16.mxu0 0
  %639 = vmatpush1.bf16.msra.mxu0 0
  %640 = vmatprep.subr.bf16.mxu0 0
  %641 = vmatpush1.bf16.msra.mxu0 0
  %642 = vmatprep.subr.bf16.mxu0 0
  %643 = vmatpush1.bf16.msra.mxu0 0
  %644 = vmatprep.subr.bf16.mxu0 0
  %645 = vmatpush1.bf16.msra.mxu0 0
  %646 = vmatprep.subr.bf16.mxu0 0
  %647 = vmatpush1.bf16.msra.mxu0 0
  %648 = vmatprep.subr.bf16.mxu0 0
  %649 = vmatpush1.bf16.msra.mxu0 0
  %650 = vmatprep.subr.bf16.mxu0 0
  %651 = vmatpush1.bf16.msra.mxu0 0
  %652 = vmatprep.subr.bf16.mxu0 0
  %653 = vmatpush1.bf16.msra.mxu0 0
  %654 = vmatprep.mubr.bf16.mxu0 0
  %655 = vmatmul.mubr.bf16.gmra.mrb[0].mxu0 %v599
  %v656 = vpop.f32.mrb[0].mxu0
  %v657 = vadd.f32 %v52, %v656
  %v658 = vpop.f32.mrb[0].mxu0
  %v659 = vpop.f32.mrb[0].mxu0
  %v660 = vadd.f32 %v52, %v659
  %v661 = vpop.f32.mrb[0].mxu0
  %662 = vmatprep.mubr.bf16.mxu0 0
  %663 = vmatmul.mubr.bf16.gmra.mrb[0].mxu0 %v602
  %v664 = vpop.f32.mrb[0].mxu0
  %v665 = vadd.f32 %v52, %v664
  %v666 = vpop.f32.mrb[0].mxu0
  %v667 = vpop.f32.mrb[0].mxu0
  %v668 = vadd.f32 %v52, %v667
  %v669 = vpop.f32.mrb[0].mxu0
  %670 = vmatprep.mubr.bf16.mxu0 0
  %671 = vmatmul.mubr.bf16.gmra.mrb[0].mxu0 %v605
  %v672 = vpop.f32.mrb[0].mxu0
  %v673 = vadd.f32 %v52, %v672
  %v674 = vpop.f32.mrb[0].mxu0
  %v675 = vpop.f32.mrb[0].mxu0
  %v676 = vadd.f32 %v52, %v675
  %v677 = vpop.f32.mrb[0].mxu0
  %678 = vmatprep.mubr.bf16.mxu0 0
  %679 = vmatmul.mubr.bf16.gmra.mrb[0].mxu0 %v608
  %v680 = vpop.f32.mrb[0].mxu0
  %v681 = vadd.f32 %v52, %v680
  %v682 = vpop.f32.mrb[0].mxu0
  %v683 = vpop.f32.mrb[0].mxu0
  %v684 = vadd.f32 %v52, %v683
  %v685 = vpop.f32.mrb[0].mxu0
  %686 = vmatprep.mubr.bf16.mxu0 0
  %687 = vmatmul.mubr.bf16.gmra.mrb[0].mxu0 %v611
  %v688 = vpop.f32.mrb[0].mxu0
  %v689 = vadd.f32 %v52, %v688
  %v690 = vpop.f32.mrb[0].mxu0
  %v691 = vpop.f32.mrb[0].mxu0
  %v692 = vadd.f32 %v52, %v691
  %v693 = vpop.f32.mrb[0].mxu0
  %694 = vmatprep.mubr.bf16.mxu0 0
  %695 = vmatmul.mubr.bf16.gmra.mrb[0].mxu0 %v614
  %v696 = vpop.f32.mrb[0].mxu0
  %v697 = vadd.f32 %v52, %v696
  %v698 = vpop.f32.mrb[0].mxu0
  %v699 = vpop.f32.mrb[0].mxu0
  %v700 = vadd.f32 %v52, %v699
  %v701 = vpop.f32.mrb[0].mxu0
  %702 = vmatprep.mubr.bf16.mxu0 0
  %703 = vmatmul.mubr.bf16.gmra.mrb[0].mxu0 %v617
  %v704 = vpop.f32.mrb[0].mxu0
  %v705 = vadd.f32 %v52, %v704
  %v706 = vpop.f32.mrb[0].mxu0
  %v707 = vpop.f32.mrb[0].mxu0
  %v708 = vadd.f32 %v52, %v707
  %v709 = vpop.f32.mrb[0].mxu0
  %710 = vmatprep.mubr.bf16.mxu0 0
  %711 = vmatmul.mubr.bf16.gmra.mrb[0].mxu0 %v620
  %v712 = vpop.f32.mrb[0].mxu0
  %v713 = vadd.f32 %v52, %v712
  %v714 = vpop.f32.mrb[0].mxu0
  %v715 = vpop.f32.mrb[0].mxu0
  %v716 = vadd.f32 %v52, %v715
  %v717 = vpop.f32.mrb[0].mxu0
  %718 = vdwg.mxu0
  %v719 = vmax.f32 %v657, 0.0
  %v720 = vmax.f32 %v660, 0.0
  %v721 = vmax.f32 %v665, 0.0
  %v722 = vmax.f32 %v668, 0.0
  %v723 = vmax.f32 %v673, 0.0
  %v724 = vmax.f32 %v676, 0.0
  %v725 = vmax.f32 %v681, 0.0
  %v726 = vmax.f32 %v684, 0.0
  %v727 = vmax.f32 %v689, 0.0
  %v728 = vmax.f32 %v692, 0.0
  %v729 = vmax.f32 %v697, 0.0
  %v730 = vmax.f32 %v700, 0.0
  %v731 = vmax.f32 %v705, 0.0
  %v732 = vmax.f32 %v708, 0.0
  %v733 = vmax.f32 %v713, 0.0
  %v734 = vmax.f32 %v716, 0.0
  %v735 = vld [vmem:[%s3 + $0x8] sm:$0xf]
  %v736 = vpack.c.bf16 %v720, %v719
  %v737 = vpack.c.bf16 %v722, %v721
  %v738 = vpack.c.bf16 %v724, %v723
  %v739 = vpack.c.bf16 %v726, %v725
  %v740 = vpack.c.bf16 %v728, %v727
  %v741 = vpack.c.bf16 %v730, %v729
  %v742 = vpack.c.bf16 %v732, %v731
  %v743 = vpack.c.bf16 %v734, %v733
  %744 = vmatprep.subr.bf16.mxu0 0
  %745 = vmatpush1.bf16.msra.mxu0 %v736
  %746 = vmatprep.subr.bf16.mxu0 0
  %747 = vmatpush1.bf16.msra.mxu0 %v737
  %748 = vmatprep.subr.bf16.mxu0 0
  %749 = vmatpush1.bf16.msra.mxu0 %v738
  %750 = vmatprep.subr.bf16.mxu0 0
  %751 = vmatpush1.bf16.msra.mxu0 %v739
  %752 = vmatprep.subr.bf16.mxu0 0
  %753 = vmatpush1.bf16.msra.mxu0 %v740
  %754 = vmatprep.subr.bf16.mxu0 0
  %755 = vmatpush1.bf16.msra.mxu0 %v741
  %756 = vmatprep.subr.bf16.mxu0 0
  %757 = vmatpush1.bf16.msra.mxu0 %v742
  %758 = vmatprep.subr.bf16.mxu0 0
  %759 = vmatpush1.bf16.msra.mxu0 %v743
  %760 = vmatprep.subr.bf16.mxu0 0
  %761 = vmatpush1.bf16.msra.mxu0 0
  %762 = vmatprep.subr.bf16.mxu0 0
  %763 = vmatpush1.bf16.msra.mxu0 0
  %764 = vmatprep.subr.bf16.mxu0 0
  %765 = vmatpush1.bf16.msra.mxu0 0
  %766 = vmatprep.subr.bf16.mxu0 0
  %767 = vmatpush1.bf16.msra.mxu0 0
  %768 = vmatprep.subr.bf16.mxu0 0
  %769 = vmatpush1.bf16.msra.mxu0 0
  %770 = vmatprep.subr.bf16.mxu0 0
  %771 = vmatpush1.bf16.msra.mxu0 0
  %772 = vmatprep.subr.bf16.mxu0 0
  %773 = vmatpush1.bf16.msra.mxu0 0
  %774 = vmatprep.subr.bf16.mxu0 0
  %775 = vmatpush1.bf16.msra.mxu0 0
  %776 = vmatprep.mubr.bf16.mxu0 0
  %777 = vmatmul.mubr.bf16.gmra.mrb[0].mxu0 %v735
  %v778 = vpop.f32.mrb[0].mxu0
  %v779 = vadd.f32 0.0, %v778
  %v780 = vpop.f32.mrb[0].mxu0
  %v781 = vpop.f32.mrb[0].mxu0
  %v782 = vpop.f32.mrb[0].mxu0
  %783 = vdwg.mxu0
  %v784 = vadd.f32 %v537, %v779
  %v785 = vld [vmem:[%s0 + $0xc0] sm:$0xf]
  %v786 = vld [vmem:[%s0 + $0xc4] sm:$0xf]
  %v787 = vld [vmem:[%s0 + $0xc8] sm:$0xf]
  %v788 = vld [vmem:[%s0 + $0xcc] sm:$0xf]
  %v789 = vld [vmem:[%s0 + $0xd0] sm:$0xf]
  %v790 = vld [vmem:[%s0 + $0xd4] sm:$0xf]
  %v791 = vld [vmem:[%s0 + $0xd8] sm:$0xf]
  %v792 = vld [vmem:[%s0 + $0xdc] sm:$0xf]
  %v793 = vld [vmem:[%s0 + $0xe0] sm:$0xf]
  %v794 = vld [vmem:[%s0 + $0xe4] sm:$0xf]
  %v795 = vld [vmem:[%s0 + $0xe8] sm:$0xf]
  %v796 = vld [vmem:[%s0 + $0xec] sm:$0xf]
  %v797 = vld [vmem:[%s0 + $0xf0] sm:$0xf]
  %v798 = vld [vmem:[%s0 + $0xf4] sm:$0xf]
  %v799 = vld [vmem:[%s0 + $0xf8] sm:$0xf]
  %v800 = vld [vmem:[%s0 + $0xfc] sm:$0xf]
  %v817 = vunpack.c.l.b16 %v785
  %v818 = vunpack.c.l.b16 %v786
  %v819 = vunpack.c.l.b16 %v787
  %v820 = vunpack.c.l.b16 %v788
  %v821 = vunpack.c.l.b16 %v789
  %v822 = vunpack.c.l.b16 %v790
  %v823 = vunpack.c.l.b16 %v791
  %v824 = vunpack.c.l.b16 %v792
  %v825 = vunpack.c.l.b16 %v793
  %v826 = vunpack.c.l.b16 %v794
  %v827 = vunpack.c.l.b16 %v795
  %v828 = vunpack.c.l.b16 %v796
  %v829 = vunpack.c.l.b16 %v797
  %v830 = vunpack.c.l.b16 %v798
  %v831 = vunpack.c.l.b16 %v799
  %v832 = vunpack.c.l.b16 %v800
  %v833 = vpack.c.b16 %v818, %v817
  %v834 = vpack.c.b16 %v820, %v819
  %v835 = vpack.c.b16 %v822, %v821
  %v836 = vpack.c.b16 %v824, %v823
  %v837 = vpack.c.b16 %v826, %v825
  %v838 = vpack.c.b16 %v828, %v827
  %v839 = vpack.c.b16 %v830, %v829
  %v840 = vpack.c.b16 %v832, %v831
  %v842 = vsel %vm109, %v833, 0
  %v845 = vsel %vm109, %v834, 0
  %v848 = vsel %vm109, %v835, 0
  %v851 = vsel %vm109, %v836, 0
  %v854 = vsel %vm109, %v837, 0
  %v857 = vsel %vm109, %v838, 0
  %v860 = vsel %vm109, %v839, 0
  %v863 = vsel %vm109, %v840, 0
  %865 = vmatprep.subr.bf16.mxu0 0
  %866 = vmatpush1.bf16.msra.mxu0 %v104
  %867 = vmatprep.subr.bf16.mxu0 0
  %868 = vmatpush1.bf16.msra.mxu0 %v105
  %869 = vmatprep.subr.bf16.mxu0 0
  %870 = vmatpush1.bf16.msra.mxu0 %v136
  %871 = vmatprep.subr.bf16.mxu0 0
  %872 = vmatpush1.bf16.msra.mxu0 0
  %873 = vmatprep.subr.bf16.mxu0 0
  %874 = vmatpush1.bf16.msra.mxu0 0
  %875 = vmatprep.subr.bf16.mxu0 0
  %876 = vmatpush1.bf16.msra.mxu0 0
  %877 = vmatprep.subr.bf16.mxu0 0
  %878 = vmatpush1.bf16.msra.mxu0 0
  %879 = vmatprep.subr.bf16.mxu0 0
  %880 = vmatpush1.bf16.msra.mxu0 0
  %881 = vmatprep.subr.bf16.mxu0 0
  %882 = vmatpush1.bf16.msra.mxu0 0
  %883 = vmatprep.subr.bf16.mxu0 0
  %884 = vmatpush1.bf16.msra.mxu0 0
  %885 = vmatprep.subr.bf16.mxu0 0
  %886 = vmatpush1.bf16.msra.mxu0 0
  %887 = vmatprep.subr.bf16.mxu0 0
  %888 = vmatpush1.bf16.msra.mxu0 0
  %889 = vmatprep.subr.bf16.mxu0 0
  %890 = vmatpush1.bf16.msra.mxu0 0
  %891 = vmatprep.subr.bf16.mxu0 0
  %892 = vmatpush1.bf16.msra.mxu0 0
  %893 = vmatprep.subr.bf16.mxu0 0
  %894 = vmatpush1.bf16.msra.mxu0 0
  %895 = vmatprep.subr.bf16.mxu0 0
  %896 = vmatpush1.bf16.msra.mxu0 0
  %897 = vmatprep.mubr.bf16.mxu0 0
  %898 = vmatmul.mubr.bf16.gmra.mrb[0].mxu0 %v842
  %v899 = vpop.f32.mrb[0].mxu0
  %v900 = vadd.f32 %v52, %v899
  %v901 = vpop.f32.mrb[0].mxu0
  %v902 = vpop.f32.mrb[0].mxu0
  %v903 = vadd.f32 %v52, %v902
  %v904 = vpop.f32.mrb[0].mxu0
  %905 = vmatprep.mubr.bf16.mxu0 0
  %906 = vmatmul.mubr.bf16.gmra.mrb[0].mxu0 %v845
  %v907 = vpop.f32.mrb[0].mxu0
  %v908 = vadd.f32 %v52, %v907
  %v909 = vpop.f32.mrb[0].mxu0
  %v910 = vpop.f32.mrb[0].mxu0
  %v911 = vadd.f32 %v52, %v910
  %v912 = vpop.f32.mrb[0].mxu0
  %913 = vmatprep.mubr.bf16.mxu0 0
  %914 = vmatmul.mubr.bf16.gmra.mrb[0].mxu0 %v848
  %v915 = vpop.f32.mrb[0].mxu0
  %v916 = vadd.f32 %v52, %v915
  %v917 = vpop.f32.mrb[0].mxu0
  %v918 = vpop.f32.mrb[0].mxu0
  %v919 = vadd.f32 %v52, %v918
  %v920 = vpop.f32.mrb[0].mxu0
  %921 = vmatprep.mubr.bf16.mxu0 0
  %922 = vmatmul.mubr.bf16.gmra.mrb[0].mxu0 %v851
  %v923 = vpop.f32.mrb[0].mxu0
  %v924 = vadd.f32 %v52, %v923
  %v925 = vpop.f32.mrb[0].mxu0
  %v926 = vpop.f32.mrb[0].mxu0
  %v927 = vadd.f32 %v52, %v926
  %v928 = vpop.f32.mrb[0].mxu0
  %929 = vmatprep.mubr.bf16.mxu0 0
  %930 = vmatmul.mubr.bf16.gmra.mrb[0].mxu0 %v854
  %v931 = vpop.f32.mrb[0].mxu0
  %v932 = vadd.f32 %v52, %v931
  %v933 = vpop.f32.mrb[0].mxu0
  %v934 = vpop.f32.mrb[0].mxu0
  %v935 = vadd.f32 %v52, %v934
  %v936 = vpop.f32.mrb[0].mxu0
  %937 = vmatprep.mubr.bf16.mxu0 0
  %938 = vmatmul.mubr.bf16.gmra.mrb[0].mxu0 %v857
  %v939 = vpop.f32.mrb[0].mxu0
  %v940 = vadd.f32 %v52, %v939
  %v941 = vpop.f32.mrb[0].mxu0
  %v942 = vpop.f32.mrb[0].mxu0
  %v943 = vadd.f32 %v52, %v942
  %v944 = vpop.f32.mrb[0].mxu0
  %945 = vmatprep.mubr.bf16.mxu0 0
  %946 = vmatmul.mubr.bf16.gmra.mrb[0].mxu0 %v860
  %v947 = vpop.f32.mrb[0].mxu0
  %v948 = vadd.f32 %v52, %v947
  %v949 = vpop.f32.mrb[0].mxu0
  %v950 = vpop.f32.mrb[0].mxu0
  %v951 = vadd.f32 %v52, %v950
  %v952 = vpop.f32.mrb[0].mxu0
  %953 = vmatprep.mubr.bf16.mxu0 0
  %954 = vmatmul.mubr.bf16.gmra.mrb[0].mxu0 %v863
  %v955 = vpop.f32.mrb[0].mxu0
  %v956 = vadd.f32 %v52, %v955
  %v957 = vpop.f32.mrb[0].mxu0
  %v958 = vpop.f32.mrb[0].mxu0
  %v959 = vadd.f32 %v52, %v958
  %v960 = vpop.f32.mrb[0].mxu0
  %961 = vdwg.mxu0
  %v962 = vmax.f32 %v900, 0.0
  %v963 = vmax.f32 %v903, 0.0
  %v964 = vmax.f32 %v908, 0.0
  %v965 = vmax.f32 %v911, 0.0
  %v966 = vmax.f32 %v916, 0.0
  %v967 = vmax.f32 %v919, 0.0
  %v968 = vmax.f32 %v924, 0.0
  %v969 = vmax.f32 %v927, 0.0
  %v970 = vmax.f32 %v932, 0.0
  %v971 = vmax.f32 %v935, 0.0
  %v972 = vmax.f32 %v940, 0.0
  %v973 = vmax.f32 %v943, 0.0
  %v974 = vmax.f32 %v948, 0.0
  %v975 = vmax.f32 %v951, 0.0
  %v976 = vmax.f32 %v956, 0.0
  %v977 = vmax.f32 %v959, 0.0
  %v978 = vld [vmem:[%s3 + $0xc] sm:$0xf]
  %v979 = vpack.c.bf16 %v963, %v962
  %v980 = vpack.c.bf16 %v965, %v964
  %v981 = vpack.c.bf16 %v967, %v966
  %v982 = vpack.c.bf16 %v969, %v968
  %v983 = vpack.c.bf16 %v971, %v970
  %v984 = vpack.c.bf16 %v973, %v972
  %v985 = vpack.c.bf16 %v975, %v974
  %v986 = vpack.c.bf16 %v977, %v976
  %987 = vmatprep.subr.bf16.mxu0 0
  %988 = vmatpush1.bf16.msra.mxu0 %v979
  %989 = vmatprep.subr.bf16.mxu0 0
  %990 = vmatpush1.bf16.msra.mxu0 %v980
  %991 = vmatprep.subr.bf16.mxu0 0
  %992 = vmatpush1.bf16.msra.mxu0 %v981
  %993 = vmatprep.subr.bf16.mxu0 0
  %994 = vmatpush1.bf16.msra.mxu0 %v982
  %995 = vmatprep.subr.bf16.mxu0 0
  %996 = vmatpush1.bf16.msra.mxu0 %v983
  %997 = vmatprep.subr.bf16.mxu0 0
  %998 = vmatpush1.bf16.msra.mxu0 %v984
  %999 = vmatprep.subr.bf16.mxu0 0
  %1000 = vmatpush1.bf16.msra.mxu0 %v985
  %1001 = vmatprep.subr.bf16.mxu0 0
  %1002 = vmatpush1.bf16.msra.mxu0 %v986
  %1003 = vmatprep.subr.bf16.mxu0 0
  %1004 = vmatpush1.bf16.msra.mxu0 0
  %1005 = vmatprep.subr.bf16.mxu0 0
  %1006 = vmatpush1.bf16.msra.mxu0 0
  %1007 = vmatprep.subr.bf16.mxu0 0
  %1008 = vmatpush1.bf16.msra.mxu0 0
  %1009 = vmatprep.subr.bf16.mxu0 0
  %1010 = vmatpush1.bf16.msra.mxu0 0
  %1011 = vmatprep.subr.bf16.mxu0 0
  %1012 = vmatpush1.bf16.msra.mxu0 0
  %1013 = vmatprep.subr.bf16.mxu0 0
  %1014 = vmatpush1.bf16.msra.mxu0 0
  %1015 = vmatprep.subr.bf16.mxu0 0
  %1016 = vmatpush1.bf16.msra.mxu0 0
  %1017 = vmatprep.subr.bf16.mxu0 0
  %1018 = vmatpush1.bf16.msra.mxu0 0
  %1019 = vmatprep.mubr.bf16.mxu0 0
  %1020 = vmatmul.mubr.bf16.gmra.mrb[0].mxu0 %v978
  %v1021 = vpop.f32.mrb[0].mxu0
  %v1022 = vadd.f32 0.0, %v1021
  %v1023 = vpop.f32.mrb[0].mxu0
  %v1024 = vpop.f32.mrb[0].mxu0
  %v1025 = vpop.f32.mrb[0].mxu0
  %1026 = vdwg.mxu0
  %v1027 = vadd.f32 %v784, %v1022
  %1028 = vst [vmem:[%s7] sm:$0xff] %v1027
  %v1029 = vpack.c.bf16 %v1027, %v1027
  %v1030 = vld [vmem:[%s4] sm:$0xf]
  %v1031 = vld [vmem:[%s4 + $0x4] sm:$0xf]
  %v1032 = vld [vmem:[%s4 + $0x8] sm:$0xf]
  %v1033 = vld [vmem:[%s4 + $0xc] sm:$0xf]
  %v1034 = vld [vmem:[%s4 + $0x10] sm:$0xf]
  %v1035 = vld [vmem:[%s4 + $0x14] sm:$0xf]
  %v1036 = vld [vmem:[%s4 + $0x18] sm:$0xf]
  %v1037 = vld [vmem:[%s4 + $0x1c] sm:$0xf]
  %v1038 = vld [vmem:[%s4 + $0x20] sm:$0xf]
  %v1039 = vld [vmem:[%s4 + $0x24] sm:$0xf]
  %v1040 = vld [vmem:[%s4 + $0x28] sm:$0xf]
  %v1041 = vld [vmem:[%s4 + $0x2c] sm:$0xf]
  %v1042 = vld [vmem:[%s4 + $0x30] sm:$0xf]
  %v1043 = vld [vmem:[%s4 + $0x34] sm:$0xf]
  %v1044 = vld [vmem:[%s4 + $0x38] sm:$0xf]
  %v1045 = vld [vmem:[%s4 + $0x3c] sm:$0xf]
  %v1046 = vld [vmem:[%s5] sm:$0x1]
  %v1048 = vlaneseq
  %v1049 = vshrl.u32 %v1048, 7
  %v1050 = vsub.s32 0, %v1049
  %v1051 = vrot.slane %v1046, %v1050
  %v1069 = vunpack.c.l.b16 %v1030
  %v1070 = vunpack.c.l.b16 %v1031
  %v1071 = vunpack.c.l.b16 %v1032
  %v1072 = vunpack.c.l.b16 %v1033
  %v1073 = vunpack.c.l.b16 %v1034
  %v1074 = vunpack.c.l.b16 %v1035
  %v1075 = vunpack.c.l.b16 %v1036
  %v1076 = vunpack.c.l.b16 %v1037
  %v1077 = vunpack.c.l.b16 %v1038
  %v1078 = vunpack.c.l.b16 %v1039
  %v1079 = vunpack.c.l.b16 %v1040
  %v1080 = vunpack.c.l.b16 %v1041
  %v1081 = vunpack.c.l.b16 %v1042
  %v1082 = vunpack.c.l.b16 %v1043
  %v1083 = vunpack.c.l.b16 %v1044
  %v1084 = vunpack.c.l.b16 %v1045
  %v1085 = vpack.c.b16 %v1070, %v1069
  %v1086 = vpack.c.b16 %v1072, %v1071
  %v1087 = vpack.c.b16 %v1074, %v1073
  %v1088 = vpack.c.b16 %v1076, %v1075
  %v1089 = vpack.c.b16 %v1078, %v1077
  %v1090 = vpack.c.b16 %v1080, %v1079
  %v1091 = vpack.c.b16 %v1082, %v1081
  %v1092 = vpack.c.b16 %v1084, %v1083
  %1101 = vmatprep.subr.bf16.mxu0 0
  %1102 = vmatpush1.bf16.msra.mxu0 %v1085
  %1103 = vmatprep.subr.bf16.mxu0 0
  %1104 = vmatpush1.bf16.msra.mxu0 %v1086
  %1105 = vmatprep.subr.bf16.mxu0 0
  %1106 = vmatpush1.bf16.msra.mxu0 %v1087
  %1107 = vmatprep.subr.bf16.mxu0 0
  %1108 = vmatpush1.bf16.msra.mxu0 %v1088
  %1109 = vmatprep.subr.bf16.mxu0 0
  %1110 = vmatpush1.bf16.msra.mxu0 %v1089
  %1111 = vmatprep.subr.bf16.mxu0 0
  %1112 = vmatpush1.bf16.msra.mxu0 %v1090
  %1113 = vmatprep.subr.bf16.mxu0 0
  %1114 = vmatpush1.bf16.msra.mxu0 %v1091
  %1115 = vmatprep.subr.bf16.mxu0 0
  %1116 = vmatpush1.bf16.msra.mxu0 %v1092
  %1117 = vmatprep.subr.bf16.mxu0 0
  %1118 = vmatpush1.bf16.msra.mxu0 0
  %1119 = vmatprep.subr.bf16.mxu0 0
  %1120 = vmatpush1.bf16.msra.mxu0 0
  %1121 = vmatprep.subr.bf16.mxu0 0
  %1122 = vmatpush1.bf16.msra.mxu0 0
  %1123 = vmatprep.subr.bf16.mxu0 0
  %1124 = vmatpush1.bf16.msra.mxu0 0
  %1125 = vmatprep.subr.bf16.mxu0 0
  %1126 = vmatpush1.bf16.msra.mxu0 0
  %1127 = vmatprep.subr.bf16.mxu0 0
  %1128 = vmatpush1.bf16.msra.mxu0 0
  %1129 = vmatprep.subr.bf16.mxu0 0
  %1130 = vmatpush1.bf16.msra.mxu0 0
  %1131 = vmatprep.subr.bf16.mxu0 0
  %1132 = vmatpush1.bf16.msra.mxu0 0
  %1133 = vmatprep.mubr.bf16.mxu0 0
  %1134 = vmatmul.mubr.bf16.gmra.mrb[0].mxu0 %v1029
  %v1135 = vpop.f32.mrb[0].mxu0
  %v1136 = vadd.f32 %v1051, %v1135
  %v1137 = vpop.f32.mrb[0].mxu0
  %v1138 = vpop.f32.mrb[0].mxu0
  %v1139 = vpop.f32.mrb[0].mxu0
  %1140 = vdwg.mxu0
  %1141 = vst [vmem:[%s6] sm:$0xff] %v1136
  // Predicated region
  $region26: #{adversarial_forward.1} parent=0 // pred_check
    _
  $region27: #{adversarial_forward.1} parent=0 // pred_check_branch
    %1143 = sbr.rel (0) target = $region29
  $region28: #{adversarial_forward.1} parent=0 // pred_region
    _
  $region29: #{adversarial_forward.1} parent=0 // pred_fallthru
    _
  // Predicated region
  $region30: #{adversarial_forward.1} parent=0 // pred_check
    _
  $region31: #{adversarial_forward.1} parent=0 // pred_check_branch
    %1145 = sbr.rel (0) target = $region33
  $region32: #{adversarial_forward.1} parent=0 // pred_region
    _
  $region33: #{adversarial_forward.1} parent=0 // pred_fallthru
    _
  // Predicated region
  $region34: #{adversarial_forward.1} parent=0 // pred_check
    _
  $region35: #{adversarial_forward.1} parent=0 // pred_check_branch
    %1147 = sbr.rel (0) target = $region37
  $region36: #{adversarial_forward.1} parent=0 // pred_region
    _
  $region37: #{adversarial_forward.1} parent=0 // pred_fallthru
    _
  // Predicated region
  $region38: #{adversarial_forward.1} parent=0 // pred_check
    _
  $region39: #{adversarial_forward.1} parent=0 // pred_check_branch
    %1149 = sbr.rel (0) target = $region41
  $region40: #{adversarial_forward.1} parent=0 // pred_region
    _
  $region41: #{adversarial_forward.1} parent=0 // pred_fallthru
    _

</llo_original>
